<compile_context>
chip_gen: v6e
topology: v6e:2x2x1
jax: 0.10.0
libtpu: 0.0.40
codegen_flags: <defaults>
</compile_context>

<pallas_src>
import functools
import math

import jax
import jax.numpy as jnp
from jax.experimental import pallas as pl
from jax.experimental.pallas import tpu as pltpu


# ----------------------------------------------------------------------------
# activations (evaluated INSIDE kernels)
# ----------------------------------------------------------------------------
def _apply_act(y, act):
    if act == "none":
        return y
    if act == "relu":
        return jnp.maximum(y, 0.0)
    if act == "hardswish":            # torch F.hardswish
        return y * jnp.clip(y + 3.0, 0.0, 6.0) * (1.0 / 6.0)
    if act == "hardsigmoid":          # torch F.hardsigmoid
        return jnp.clip(y * (1.0 / 6.0) + 0.5, 0.0, 1.0)
    if act == "swish":                # x * sigmoid(x)
        return y * jax.nn.sigmoid(y)
    raise ValueError(act)


def _ln_rows(x2, gamma, beta, real_d, eps):
    """LayerNorm over the last dim of a 2-D tile; statistics use only the
    first `real_d` (un-padded) features.  Padded lanes must be zero on input
    and come out zero because gamma/beta are zero there."""
    d = x2.shape[-1]
    inv_n = 1.0 / float(real_d)
    if real_d == d:
        mean = jnp.mean(x2, axis=-1, keepdims=True)
        xc = x2 - mean
        var = jnp.mean(xc * xc, axis=-1, keepdims=True)
    else:
        mask = (jax.lax.broadcasted_iota(jnp.int32, (1, d), 1) < real_d).astype(jnp.float32)
        mean = jnp.sum(x2 * mask, axis=-1, keepdims=True) * inv_n
        xc = x2 - mean
        var = jnp.sum(xc * xc * mask, axis=-1, keepdims=True) * inv_n
    return xc * jax.lax.rsqrt(var + eps) * gamma + beta


# ----------------------------------------------------------------------------
# stride-phase split: x (N,H,W,C) -> (N, sh*sw*Lh, Lw, C) so that in-kernel
# tap slices are all unit-stride.  Done once per conv in plain JAX.
# ----------------------------------------------------------------------------
def _phase_split(x, k, sh, sw, pad):
    N, H, W, C = x.shape
    Ho = (H + 2 * pad - k) // sh + 1
    Wo = (W + 2 * pad - k) // sw + 1
    Lh = (k - 1) // sh + Ho
    Lw = (k - 1) // sw + Wo
    xp = jnp.pad(x, ((0, 0), (pad, sh * Lh - H - pad), (pad, sw * Lw - W - pad), (0, 0)))
    xp = xp.reshape(N, Lh, sh, Lw, sw, C)
    xp = jnp.transpose(xp, (0, 2, 4, 1, 3, 5)).reshape(N, sh * sw * Lh, Lw, C)
    return xp, Ho, Wo, Lh, Lw


# im2col for the stem conv (Cin=3): tiny patch matrix, built in the wrapper so
# the MXU sees a single K=27 contraction instead of 9 K=3 pushes.
def _im2col(x, k, stride, pad):
    N, H, W, C = x.shape
    sh, sw = stride
    Ho = (H + 2 * pad - k) // sh + 1
    Wo = (W + 2 * pad - k) // sw + 1
    xp = jnp.pad(x, ((0, 0), (pad, pad), (pad, pad), (0, 0)))
    taps = []
    for kh in range(k):
        for kw in range(k):
            taps.append(xp[:, kh:kh + sh * (Ho - 1) + 1:sh,
                           kw:kw + sw * (Wo - 1) + 1:sw, :])
    pm = jnp.concatenate(taps, axis=-1)                    # (N, Ho, Wo, k*k*C)
    return pm.reshape(N * Ho * Wo, k * k * C), Ho, Wo


# ----------------------------------------------------------------------------
# Kernel 1: matmul + bias + act (optionally tiled over N; used for the stem
#           im2col conv and the CTC head).  bf16 operands, f32 MXU accumulate.
# ----------------------------------------------------------------------------
def _mm_kernel(x_ref, w_ref, b_ref, o_ref, *, act):
    y = jnp.dot(x_ref[...].astype(jnp.bfloat16), w_ref[...],
                preferred_element_type=jnp.float32) + b_ref[...]
    o_ref[...] = _apply_act(y, act).astype(o_ref.dtype)


def matmul_bias_act(x, w, bias, act="none", tile_n=None, out_dtype=jnp.float32):
    M, K = x.shape
    N = w.shape[1]
    if tile_n is None or tile_n >= N or (N % tile_n) != 0:
        tile_n = N
    grid_n = N // tile_n
    return pl.pallas_call(
        functools.partial(_mm_kernel, act=act),
        grid=(grid_n,),
        in_specs=[
            pl.BlockSpec((M, K), lambda j: (0, 0)),
            pl.BlockSpec((K, tile_n), lambda j: (0, j)),
            pl.BlockSpec((1, tile_n), lambda j: (0, j)),
        ],
        out_specs=pl.BlockSpec((M, tile_n), lambda j: (0, j)),
        out_shape=jax.ShapeDtypeStruct((M, N), out_dtype),
        compiler_params=pltpu.CompilerParams(dimension_semantics=("parallel",)),
    )(x, w, bias)


# ----------------------------------------------------------------------------
# Kernel 2: fused LayerNorm + matmul + bias + act (final SVTR norm + conv3),
#           tiled over batch rows so v7x's second TensorCore participates.
# ----------------------------------------------------------------------------
def _ln_mm_kernel(x_ref, g_ref, be_ref, w_ref, b_ref, o_ref, *, real_d, eps, act):
    y = _ln_rows(x_ref[...].astype(jnp.float32), g_ref[...], be_ref[...], real_d, eps)
    z = jnp.dot(y.astype(jnp.bfloat16), w_ref[...],
                preferred_element_type=jnp.float32) + b_ref[...]
    o_ref[...] = _apply_act(z, act).astype(o_ref.dtype)


def layernorm_matmul_bias_act(x2, gamma, beta, w, b, *, real_d, eps, act,
                              tile_m=None, out_dtype=jnp.float32):
    M, D = x2.shape
    N = w.shape[1]
    if tile_m is None or tile_m >= M or (M % tile_m) != 0 or (tile_m % 8) != 0:
        tile_m = M
    grid_m = M // tile_m
    return pl.pallas_call(
        functools.partial(_ln_mm_kernel, real_d=real_d, eps=eps, act=act),
        grid=(grid_m,),
        in_specs=[
            pl.BlockSpec((tile_m, D), lambda i: (i, 0)),
            pl.BlockSpec((1, D), lambda i: (0, 0)),
            pl.BlockSpec((1, D), lambda i: (0, 0)),
            pl.BlockSpec((D, N), lambda i: (0, 0)),
            pl.BlockSpec((1, N), lambda i: (0, 0)),
        ],
        out_specs=pl.BlockSpec((tile_m, N), lambda i: (i, 0)),
        out_shape=jax.ShapeDtypeStruct((M, N), out_dtype),
        compiler_params=pltpu.CompilerParams(dimension_semantics=("parallel",)),
    )(x2, gamma, beta, w, b)


# ----------------------------------------------------------------------------
# Kernel 3: fused KxK conv (per-tap matmuls) + act + pointwise 1x1 + act.
#           Used for neck conv1+conv2 and conv4+conv1x1; the narrow
#           intermediate stays resident in VMEM.
# ----------------------------------------------------------------------------
def _conv_pw_kernel(x_ref, w_ref, b_ref, wpw_ref, bpw_ref, o_ref,
                    *, k, sh, sw, Ho, Wo, Lh, act1, act2):
    Cin = x_ref.shape[-1]
    Cmid = w_ref.shape[-1]
    Cout = o_ref.shape[-1]
    x = x_ref[0]                           # (sh*sw*Lh, Lw, Cin) bf16
    w = w_ref[...]                         # (k*k, Cin, Cmid) bf16, BN folded
    acc = jnp.zeros((Ho * Wo, Cmid), jnp.float32)
    for kh in range(k):
        for kw in range(k):
            p = (kh % sh) * sw + (kw % sw)
            r0 = p * Lh + kh // sh
            c0 = kw // sw
            xs = x[r0:r0 + Ho, c0:c0 + Wo, :].reshape(Ho * Wo, Cin)
            acc = acc + jnp.dot(xs.astype(jnp.bfloat16), w[kh * k + kw],
                                preferred_element_type=jnp.float32)
    y = _apply_act(acc + b_ref[...], act1)
    z = jnp.dot(y.astype(jnp.bfloat16), wpw_ref[...],
                preferred_element_type=jnp.float32) + bpw_ref[...]
    o_ref[0] = _apply_act(z, act2).reshape(Ho, Wo, Cout).astype(o_ref.dtype)


def conv2d_pw_block(x, cp, *, act1, act2, out_dtype=jnp.bfloat16):
    N, H, W, Cin = x.shape
    k, pad = cp["k"], cp["pad"]
    sh, sw = 1, 1                          # both fused neck convs are stride 1
    xps, Ho, Wo, Lh, Lw = _phase_split(x, k, sh, sw, pad)
    Cmid = cp["w"].shape[-1]
    Cout = cp["pw_w"].shape[-1]
    return pl.pallas_call(
        functools.partial(_conv_pw_kernel, k=k, sh=sh, sw=sw, Ho=Ho, Wo=Wo,
                          Lh=Lh, act1=act1, act2=act2),
        grid=(N,),
        in_specs=[
            pl.BlockSpec((1, Lh, Lw, Cin), lambda n: (n, 0, 0, 0)),
            pl.BlockSpec((k * k, Cin, Cmid), lambda n: (0, 0, 0)),
            pl.BlockSpec((1, Cmid), lambda n: (0, 0)),
            pl.BlockSpec((Cmid, Cout), lambda n: (0, 0)),
            pl.BlockSpec((1, Cout), lambda n: (0, 0)),
        ],
        out_specs=pl.BlockSpec((1, Ho, Wo, Cout), lambda n: (n, 0, 0, 0)),
        out_shape=jax.ShapeDtypeStruct((N, Ho, Wo, Cout), out_dtype),
        compiler_params=pltpu.CompilerParams(dimension_semantics=("parallel",)),
    )(xps, cp["w"], cp["b"], cp["pw_w"], cp["pw_b"])


# ----------------------------------------------------------------------------
# Kernel 4: fused MobileNet block = depthwise conv (+folded BN, hardswish)
#           [+ SE]  + pointwise 1x1 (+folded BN, hardswish).  One launch per
#           block, feature map never leaves VMEM in between; bf16 in / bf16
#           out, f32 accumulation inside.
# ----------------------------------------------------------------------------
def _dws_block_kernel(*args, k, sh, sw, Ho, Wo, Lh, has_se):
    if has_se:
        (x_ref, wdw_ref, bdw_ref, w1_ref, b1_ref, w2_ref, b2_ref,
         wpw_ref, bpw_ref, o_ref) = args
    else:
        x_ref, wdw_ref, bdw_ref, wpw_ref, bpw_ref, o_ref = args
    C = x_ref.shape[-1]
    Cout = o_ref.shape[-1]
    # TODO(synk): C=16/32/64 blocks use only C/128 lanes per vreg in this
    # depthwise accumulate; a (H, W*C) lane repack would recover VPU
    # efficiency but is not implemented.
    x = x_ref[0].astype(jnp.float32)       # (sh*sw*Lh, Lw, C); f32 VPU accumulate (v5e-safe)
    wdw = wdw_ref[...]                     # (k*k, C) f32, BN-scale folded
    acc = jnp.zeros((Ho, Wo, C), jnp.float32)
    for kh in range(k):
        for kw in range(k):
            p = (kh % sh) * sw + (kw % sw)
            r0 = p * Lh + kh // sh
            c0 = kw // sw
            acc = acc + x[r0:r0 + Ho, c0:c0 + Wo, :] * wdw[kh * k + kw]
    y = _apply_act(acc.reshape(Ho * Wo, C) + bdw_ref[...], "hardswish")
    if has_se:
        pooled = jnp.mean(y, axis=0, keepdims=True)                      # (1, C)
        g = jnp.dot(pooled, w1_ref[...], preferred_element_type=jnp.float32) + b1_ref[...]
        g = jnp.maximum(g, 0.0)
        g = jnp.dot(g, w2_ref[...], preferred_element_type=jnp.float32) + b2_ref[...]
        g = jnp.clip(g * (1.0 / 6.0) + 0.5, 0.0, 1.0)                    # hardsigmoid
        y = y * g
    z = jnp.dot(y.astype(jnp.bfloat16), wpw_ref[...],
                preferred_element_type=jnp.float32) + bpw_ref[...]
    o_ref[0] = _apply_act(z, "hardswish").reshape(Ho, Wo, Cout).astype(o_ref.dtype)


def depthwise_separable_block(x, blk):
    N, H, W, C = x.shape
    sh, sw = blk["stride"]
    k, pad = blk["k"], blk["pad"]
    xps, Ho, Wo, Lh, Lw = _phase_split(x, k, sh, sw, pad)
    P = sh * sw
    Cout = blk["pw_w"].shape[-1]
    has_se = "se_w1" in blk
    ins = [xps, blk["dw_w"], blk["dw_b"]]
    in_specs = [
        pl.BlockSpec((1, P * Lh, Lw, C), lambda n: (n, 0, 0, 0)),
        pl.BlockSpec((k * k, C), lambda n: (0, 0)),
        pl.BlockSpec((1, C), lambda n: (0, 0)),
    ]
    if has_se:
        Cse = blk["se_w1"].shape[-1]
        ins += [blk["se_w1"], blk["se_b1"], blk["se_w2"], blk["se_b2"]]
        in_specs += [
            pl.BlockSpec((C, Cse), lambda n: (0, 0)),
            pl.BlockSpec((1, Cse), lambda n: (0, 0)),
            pl.BlockSpec((Cse, C), lambda n: (0, 0)),
            pl.BlockSpec((1, C), lambda n: (0, 0)),
        ]
    ins += [blk["pw_w"], blk["pw_b"]]
    in_specs += [
        pl.BlockSpec((C, Cout), lambda n: (0, 0)),
        pl.BlockSpec((1, Cout), lambda n: (0, 0)),
    ]
    return pl.pallas_call(
        functools.partial(_dws_block_kernel, k=k, sh=sh, sw=sw, Ho=Ho, Wo=Wo,
                          Lh=Lh, has_se=has_se),
        grid=(N,),
        in_specs=in_specs,
        out_specs=pl.BlockSpec((1, Ho, Wo, Cout), lambda n: (n, 0, 0, 0)),
        out_shape=jax.ShapeDtypeStruct((N, Ho, Wo, Cout), jnp.bfloat16),
        compiler_params=pltpu.CompilerParams(dimension_semantics=("parallel",)),
    )(*ins)


# ----------------------------------------------------------------------------
# Kernel 5: fused SVTR encoder block (prenorm=False), grid over batch:
#   x = x + proj(MHA(LN1(x)));  x = x + fc2(swish(fc1(LN2(x))))
# hidden is padded 120->128, head_dim 15->16 (padded lanes stay exactly zero).
# Attention einsums run bf16 on the MXU; per-head contexts are concatenated
# and projected with a single K=128 matmul.
# ----------------------------------------------------------------------------
def _svtr_block_kernel(x_ref, ln1g_ref, ln1b_ref, wq_ref, bq_ref, wk_ref, bk_ref,
                       wv_ref, bv_ref, wp_ref, bp_ref, ln2g_ref, ln2b_ref,
                       w1_ref, b1_ref, w2_ref, b2_ref, o_ref,
                       *, nh, hd, real_d, scale, eps):
    B, S, D = x_ref.shape
    x = x_ref[...].astype(jnp.float32).reshape(B * S, D)
    # ---- attention branch ----
    y = _ln_rows(x, ln1g_ref[...], ln1b_ref[...], real_d, eps)
    yb = y.astype(jnp.bfloat16)
    q = jnp.dot(yb, wq_ref[...], preferred_element_type=jnp.float32) + bq_ref[...]
    k = jnp.dot(yb, wk_ref[...], preferred_element_type=jnp.float32) + bk_ref[...]
    v = jnp.dot(yb, wv_ref[...], preferred_element_type=jnp.float32) + bv_ref[...]
    qb = (q * scale).astype(jnp.bfloat16).reshape(B, S, D)
    kb = k.astype(jnp.bfloat16).reshape(B, S, D)
    vb = v.astype(jnp.bfloat16).reshape(B, S, D)
    ctx = []
    for h in range(nh):
        sl = slice(h * hd, (h + 1) * hd)
        s = jnp.einsum("bsd,btd->bst", qb[:, :, sl], kb[:, :, sl],
                       preferred_element_type=jnp.float32)
        s = s - jnp.max(s, axis=-1, keepdims=True)
        pr = jnp.exp(s)
        pr = pr * pl.reciprocal(jnp.sum(pr, axis=-1, keepdims=True), approx=True)
        ctx.append(jnp.einsum("bst,btd->bsd", pr.astype(jnp.bfloat16), vb[:, :, sl],
                              preferred_element_type=jnp.float32))
    ctx = jnp.concatenate(ctx, axis=-1).reshape(B * S, D)
    attn = jnp.dot(ctx.astype(jnp.bfloat16), wp_ref[...],
                   preferred_element_type=jnp.float32) + bp_ref[...]
    x = x + attn
    # ---- MLP branch ----
    y = _ln_rows(x, ln2g_ref[...], ln2b_ref[...], real_d, eps)
    h1 = jnp.dot(y.astype(jnp.bfloat16), w1_ref[...],
                 preferred_element_type=jnp.float32) + b1_ref[...]
    h1 = _apply_act(h1, "swish")
    h2 = jnp.dot(h1.astype(jnp.bfloat16), w2_ref[...],
                 preferred_element_type=jnp.float32) + b2_ref[...]
    o_ref[...] = (x + h2).reshape(B, S, D).astype(o_ref.dtype)


_SVTR_WEIGHT_NAMES = ["ln1_g", "ln1_b", "wq", "bq", "wk", "bk", "wv", "bv",
                      "wp", "bp", "ln2_g", "ln2_b", "w1", "b1", "w2", "b2"]


def svtr_block(x, blk, real_d):
    B, S, D = x.shape
    nh, hd = blk["num_heads"], blk["head_dim"]
    scale = float(blk["head_dim_real"]) ** -0.5
    ins = [x] + [blk[n] for n in _SVTR_WEIGHT_NAMES]
    in_specs = [pl.BlockSpec((1, S, D), lambda b: (b, 0, 0))]
    in_specs += [pl.BlockSpec(blk[n].shape, lambda b: (0, 0)) for n in _SVTR_WEIGHT_NAMES]
    return pl.pallas_call(
        functools.partial(_svtr_block_kernel, nh=nh, hd=hd, real_d=real_d,
                          scale=scale, eps=1e-6),
        grid=(B,),
        in_specs=in_specs,
        out_specs=pl.BlockSpec((1, S, D), lambda b: (b, 0, 0)),
        out_shape=jax.ShapeDtypeStruct((B, S, D), jnp.float32),
        compiler_params=pltpu.CompilerParams(dimension_semantics=("parallel",)),
    )(*ins)


# ----------------------------------------------------------------------------
# deterministic parameter init (torch layouts generated, then folded / padded
# into kernel-ready layouts: bf16 matmul weights, BN scale folded, lane pads)
# ----------------------------------------------------------------------------
class _Keys:
    def __init__(self, seed=0):
        self._key = jax.random.PRNGKey(seed)

    def __call__(self):
        self._key, sub = jax.random.split(self._key)
        return sub


def _fold_bn(gamma, beta, mean, var, eps=1e-5):
    s = gamma / jnp.sqrt(var + eps)
    return s, beta - mean * s


def _bn_params(kg, c):
    gamma = 1.0 + 0.05 * jax.random.normal(kg(), (c,), jnp.float32)
    beta = 0.05 * jax.random.normal(kg(), (c,), jnp.float32)
    mean = 0.05 * jax.random.normal(kg(), (c,), jnp.float32)
    var = 1.0 + 0.05 * jnp.abs(jax.random.normal(kg(), (c,), jnp.float32))
    return gamma, beta, mean, var


def _conv_bn_taps(kg, cin, cout, k):
    w = jax.random.normal(kg(), (cout, cin, k, k), jnp.float32) / math.sqrt(cin * k * k)
    s, b = _fold_bn(*_bn_params(kg, cout))
    w = w * s[:, None, None, None]                       # fold BN scale
    w_taps = jnp.transpose(w, (2, 3, 1, 0)).reshape(k * k, cin, cout)
    return {"w": w_taps.astype(jnp.bfloat16), "b": b.reshape(1, cout)}


def _dw_conv_bn(kg, c, k):
    w = jax.random.normal(kg(), (c, 1, k, k), jnp.float32) / math.sqrt(k * k)
    s, b = _fold_bn(*_bn_params(kg, c))
    w = w * s[:, None, None, None]
    w_kk_c = jnp.transpose(w[:, 0], (1, 2, 0)).reshape(k * k, c)
    return w_kk_c, b.reshape(1, c)


def _pw_conv_bn(kg, cin, cout):
    w = jax.random.normal(kg(), (cout, cin, 1, 1), jnp.float32) / math.sqrt(cin)
    s, b = _fold_bn(*_bn_params(kg, cout))
    return (w[:, :, 0, 0] * s[:, None]).T, b             # (cin, cout), (cout,)


def _linear(kg, cin, cout, std=None):
    std = std if std is not None else 1.0 / math.sqrt(cin)
    w = std * jax.random.normal(kg(), (cout, cin), jnp.float32)   # torch (out, in)
    b = 0.01 * jax.random.normal(kg(), (cout,), jnp.float32)
    return w, b


def _layernorm_padded(kg, c, cpad):
    g = 1.0 + 0.05 * jax.random.normal(kg(), (c,), jnp.float32)
    b = 0.05 * jax.random.normal(kg(), (c,), jnp.float32)
    return (jnp.pad(g, (0, cpad - c)).reshape(1, cpad),
            jnp.pad(b, (0, cpad - c)).reshape(1, cpad))


def _svtr_block_params(kg, hidden, hidden_pad, nh, hd_real, hd_pad, mlp_h, mlp_pad):
    blk = {"num_heads": nh, "head_dim": hd_pad, "head_dim_real": hd_real}
    blk["ln1_g"], blk["ln1_b"] = _layernorm_padded(kg, hidden, hidden_pad)
    wqkv, bqkv = _linear(kg, hidden, 3 * hidden, std=0.02)
    for i, nm in enumerate(("q", "k", "v")):
        wt = wqkv[i * hidden:(i + 1) * hidden]                 # (out 120, in 120)
        bt = bqkv[i * hidden:(i + 1) * hidden]
        w = jnp.pad(wt.T, ((0, hidden_pad - hidden), (0, 0)))  # pad input rows
        w = w.reshape(hidden_pad, nh, hd_real)
        w = jnp.pad(w, ((0, 0), (0, 0), (0, hd_pad - hd_real)))
        blk["w" + nm] = w.reshape(hidden_pad, nh * hd_pad).astype(jnp.bfloat16)
        bt = jnp.pad(bt.reshape(nh, hd_real), ((0, 0), (0, hd_pad - hd_real)))
        blk["b" + nm] = bt.reshape(1, nh * hd_pad)
    wp, bp = _linear(kg, hidden, hidden, std=0.02)
    w = wp.T.reshape(nh, hd_real, hidden)
    w = jnp.pad(w, ((0, 0), (0, hd_pad - hd_real), (0, 0))).reshape(nh * hd_pad, hidden)
    blk["wp"] = jnp.pad(w, ((0, 0), (0, hidden_pad - hidden))).astype(jnp.bfloat16)
    blk["bp"] = jnp.pad(bp, (0, hidden_pad - hidden)).reshape(1, hidden_pad)
    blk["ln2_g"], blk["ln2_b"] = _layernorm_padded(kg, hidden, hidden_pad)
    w1, b1 = _linear(kg, hidden, mlp_h, std=0.02)
    blk["w1"] = jnp.pad(w1.T, ((0, hidden_pad - hidden), (0, mlp_pad - mlp_h))).astype(jnp.bfloat16)
    blk["b1"] = jnp.pad(b1, (0, mlp_pad - mlp_h)).reshape(1, mlp_pad)
    w2, b2 = _linear(kg, mlp_h, hidden, std=0.02)
    blk["w2"] = jnp.pad(w2.T, ((0, mlp_pad - mlp_h), (0, hidden_pad - hidden))).astype(jnp.bfloat16)
    blk["b2"] = jnp.pad(b2, (0, hidden_pad - hidden)).reshape(1, hidden_pad)
    return blk


def init_svtr_params(seed=0, scale=0.5, num_classes=6625):
    kg = _Keys(seed)
    p = {}
    # --- backbone: MobileNetV1Enhance(scale=0.5, last_conv_stride=[1,2], avg pool)
    c = _conv_bn_taps(kg, 3, int(32 * scale), 3)
    p["conv1"] = {"w": c["w"].reshape(9 * 3, int(32 * scale)), "b": c["b"]}  # K=27 im2col
    block_cfg = [
        # (f1, f2, stride, dw_k, pad, use_se)
        (32, 64, (1, 1), 3, 1, False),
        (64, 128, (1, 1), 3, 1, False),
        (128, 128, (1, 1), 3, 1, False),
        (128, 256, (2, 1), 3, 1, False),
        (256, 256, (1, 1), 3, 1, False),
        (256, 512, (2, 1), 3, 1, False),
    ] + [(512, 512, (1, 1), 5, 2, False)] * 5 + [
        (512, 1024, (2, 1), 5, 2, True),
        (1024, 1024, (1, 2), 5, 2, True),      # last_conv_stride=[1, 2]
    ]
    blocks = []
    for (f1, f2, stride, k, pad, use_se) in block_cfg:
        cdw, cpw = int(f1 * scale), int(f2 * scale)
        dw_w, dw_b = _dw_conv_bn(kg, cdw, k)
        blk = {"k": k, "stride": stride, "pad": pad, "dw_w": dw_w, "dw_b": dw_b}
        if use_se:
            w1, b1 = _linear(kg, cdw, cdw // 4)
            w2, b2 = _linear(kg, cdw // 4, cdw)
            blk["se_w1"], blk["se_b1"] = w1.T, b1.reshape(1, -1)
            blk["se_w2"], blk["se_b2"] = w2.T, b2.reshape(1, -1)
        pw_w, pw_b = _pw_conv_bn(kg, cdw, cpw)
        blk["pw_w"] = pw_w.astype(jnp.bfloat16)
        blk["pw_b"] = pw_b.reshape(1, -1)
        blocks.append(blk)
    p["blocks"] = blocks
    backbone_out = int(1024 * scale)          # 512

    # --- neck: SequenceEncoder(encoder_type='svtr', dims=64, depth=2,
    #           hidden_dims=120, use_guide=True)
    dims, depth, hidden = 64, 2, 120
    hidden_pad = 128
    nh, hd_real, hd_pad = 8, hidden // 8, 16
    mlp_h, mlp_pad = int(hidden * 2.0), 256

    neck = {"hidden": hidden}
    # conv1 (3x3) + conv2 (1x1) fused into one kernel
    c1 = _conv_bn_taps(kg, backbone_out, backbone_out // 8, 3)
    w2p, b2p = _pw_conv_bn(kg, backbone_out // 8, hidden)
    neck["conv12"] = {
        "k": 3, "pad": 1, "w": c1["w"], "b": c1["b"],
        "pw_w": jnp.pad(w2p, ((0, 0), (0, hidden_pad - hidden))).astype(jnp.bfloat16),
        "pw_b": jnp.pad(b2p, (0, hidden_pad - hidden)).reshape(1, hidden_pad),
    }
    w3, b3 = _pw_conv_bn(kg, hidden, backbone_out)
    neck["conv3_w"] = jnp.pad(w3, ((0, hidden_pad - hidden), (0, 0))).astype(jnp.bfloat16)
    neck["conv3_b"] = b3.reshape(1, backbone_out)
    # conv4 (3x3) + conv1x1 fused into one kernel
    c4 = _conv_bn_taps(kg, 2 * backbone_out, backbone_out // 8, 3)
    w1x, b1x = _pw_conv_bn(kg, backbone_out // 8, dims)
    neck["conv4x"] = {"k": 3, "pad": 1, "w": c4["w"], "b": c4["b"],
                      "pw_w": w1x.astype(jnp.bfloat16), "pw_b": b1x.reshape(1, dims)}
    neck["norm_g"], neck["norm_b"] = _layernorm_padded(kg, hidden, hidden_pad)
    neck["blocks"] = [_svtr_block_params(kg, hidden, hidden_pad, nh, hd_real,
                                         hd_pad, mlp_h, mlp_pad)
                      for _ in range(depth)]
    p["neck"] = neck

    # --- head: CTCHead(64, out_channels=num_classes); classes padded to 128 mult
    ncls_pad = ((num_classes + 127) // 128) * 128
    wh, bh = _linear(kg, dims, num_classes, std=0.02)
    p["head_w"] = jnp.pad(wh.T, ((0, 0), (0, ncls_pad - num_classes))).astype(jnp.bfloat16)
    p["head_b"] = jnp.pad(bh, (0, ncls_pad - num_classes)).reshape(1, ncls_pad)
    p["num_classes"] = num_classes
    return p


# ----------------------------------------------------------------------------
# forward pass
# ----------------------------------------------------------------------------
def backbone_forward(x_nhwc, p):
    N = x_nhwc.shape[0]
    # stem conv 3x3/s2 + BN + hardswish as a single K=27 matmul
    patches, Ho, Wo = _im2col(x_nhwc.astype(jnp.bfloat16), k=3, stride=(2, 2), pad=1)
    c = p["conv1"]
    x = matmul_bias_act(patches, c["w"], c["b"], act="hardswish",
                        out_dtype=jnp.bfloat16)
    x = x.reshape(N, Ho, Wo, -1)
    # TODO(synk): the five identical 5x5/C=256 blocks could be fused into one
    # kernel to remove 4 HBM round-trips of a tiny feature map.
    for blk in p["blocks"]:
        x = depthwise_separable_block(x, blk)
    # last_pool_type='avg' -> AvgPool2d(kernel_size=2, stride=2); floor odd dims
    N, H, W, C = x.shape
    x = x[:, :2 * (H // 2), :2 * (W // 2), :]
    x = x.astype(jnp.float32).reshape(N, H // 2, 2, W // 2, 2, C).mean(axis=(2, 4))
    return x.astype(jnp.bfloat16)                           # (N, 1, W', 512)


def neck_forward(x, p):
    h = x                                   # use_guide=True: detached copy (same values)
    # conv1 (3x3, swish) + conv2 (1x1, swish) fused; output feeds the encoder
    z = conv2d_pw_block(x, p["conv12"], act1="swish", act2="swish",
                        out_dtype=jnp.float32)
    N, H, W, D = z.shape                    # D = 128 (padded from 120)
    z = z.reshape(N, H * W, D)              # == flatten(2).permute(0,2,1) on NCHW
    for blk in p["blocks"]:
        z = svtr_block(z, blk, real_d=p["hidden"])
    z = layernorm_matmul_bias_act(z.reshape(N * H * W, D), p["norm_g"], p["norm_b"],
                                  p["conv3_w"], p["conv3_b"],
                                  real_d=p["hidden"], eps=1e-6, act="swish",
                                  tile_m=H * W, out_dtype=jnp.bfloat16)
    z = z.reshape(N, H, W, -1)
    z = jnp.concatenate([h, z], axis=-1)    # torch.cat((h, z), dim=1) (channel axis)
    # conv4 (3x3, swish) + conv1x1 (1x1, swish) fused
    z = conv2d_pw_block(z, p["conv4x"], act1="swish", act2="swish",
                        out_dtype=jnp.bfloat16)
    return z[:, 0, :, :]                    # Im2Seq: (N, 1, W, C) -> (N, W, C)


def svtr_forward(params, x_nchw, return_feats=False):
    x = jnp.transpose(x_nchw.astype(jnp.float32), (0, 2, 3, 1))   # NCHW -> NHWC
    feat = backbone_forward(x, params)
    seq = neck_forward(feat, params["neck"])                      # (N, T, 64) bf16
    N, T, C = seq.shape
    logits = matmul_bias_act(seq.reshape(N * T, C), params["head_w"],
                             params["head_b"], act="none", tile_n=3328,
                             out_dtype=jnp.float32)
    logits = logits.reshape(N, T, -1)[:, :, :params["num_classes"]]
    # TODO(synk): some CTCHead variants apply softmax over dim=2 at eval time;
    # raw fc logits are returned here, matching the module's training output.
    if return_feats:
        return {"logits": logits, "feats": seq.astype(jnp.float32)}
    return {"logits": logits}


# ----------------------------------------------------------------------------
if __name__ == "__main__":
    NUM_CLASSES = 6625
    params = init_svtr_params(seed=0, num_classes=NUM_CLASSES)

    # tiny sanity check of the core matmul kernel against a bf16 XLA reference
    kk = jax.random.PRNGKey(1)
    k1, k2, k3 = jax.random.split(kk, 3)
    xt = jax.random.normal(k1, (16, 64), jnp.float32)
    wt = jax.random.normal(k2, (64, 256), jnp.float32).astype(jnp.bfloat16)
    bt = jax.random.normal(k3, (1, 256), jnp.float32)
    got = matmul_bias_act(xt, wt, bt, act="none")
    ref = jnp.dot(xt.astype(jnp.bfloat16), wt, preferred_element_type=jnp.float32) + bt
    assert bool(jnp.allclose(got, ref, atol=2e-2, rtol=2e-2))

    key = jax.random.PRNGKey(0)
    # NCHW input, small text-line image: (N=2, C=3, H=32, W=64) -> T = 8 steps
    x = jax.random.normal(key, (2, 3, 32, 64), jnp.float32)

    fwd = jax.jit(lambda inp: svtr_forward(params, inp))
    out = fwd(x)
    logits = jax.block_until_ready(out["logits"])

    assert logits.shape == (2, 8, NUM_CLASSES), logits.shape
    assert bool(jnp.all(jnp.isfinite(logits)))
    print("KERNEL_OK")
</pallas_src>

<mosaic_0001>
module attributes {stable_mosaic.version = 11 : i64} {
  func.func @_mm_kernel(%arg0: i32, %arg1: memref<16x64xf32, #tpu.memory_space<vmem>>, %arg2: memref<64x256xbf16, #tpu.memory_space<vmem>>, %arg3: memref<1x256xf32, #tpu.memory_space<vmem>>, %arg4: memref<16x256xf32, #tpu.memory_space<vmem>>) attributes {dimension_semantics = [#tpu.dimension_semantics<parallel>], iteration_bounds = array<i64: 1>, scalar_prefetch = 0 : i64, scratch_operands = 0 : i64, tpu.core_type = #tpu.core_type<tc>, window_params = [{pipeline_mode = #tpu.pipeline_mode<synchronous>, transform_indices = @transform_0, window_bounds = array<i64: 16, 64>}, {transform_indices = @transform_1, window_bounds = array<i64: 64, 256>}, {transform_indices = @transform_2, window_bounds = array<i64: 1, 256>}, {transform_indices = @transform_3, window_bounds = array<i64: 16, 256>}]} {
    %c0 = arith.constant 0 : index
    %c0_0 = arith.constant 0 : index
    %0 = vector.load %arg1[%c0, %c0_0] : memref<16x64xf32, #tpu.memory_space<vmem>>, vector<16x64xf32>
    %1 = arith.truncf %0 : vector<16x64xf32> to vector<16x64xbf16>
    %c0_1 = arith.constant 0 : index
    %c0_2 = arith.constant 0 : index
    %2 = vector.load %arg2[%c0_1, %c0_2] : memref<64x256xbf16, #tpu.memory_space<vmem>>, vector<64x256xbf16>
    %cst = arith.constant dense<0.000000e+00> : vector<16x256xf32>
    %3 = tpu.matmul %1, %2, %cst {dimension_numbers = #tpu.dot_dimension_numbers<[1], [0], [0], [1], [0, 0, 1, 1], [], []>} : vector<16x64xbf16>, vector<64x256xbf16>, vector<16x256xf32> -> vector<16x256xf32>
    %c0_3 = arith.constant 0 : index
    %c0_4 = arith.constant 0 : index
    %4 = vector.load %arg3[%c0_3, %c0_4] : memref<1x256xf32, #tpu.memory_space<vmem>>, vector<1x256xf32>
    %5 = vector.broadcast %4 : vector<1x256xf32> to vector<16x256xf32>
    %6 = arith.addf %3, %5 : vector<16x256xf32>
    %c0_5 = arith.constant 0 : index
    %c0_6 = arith.constant 0 : index
    %7 = vector.load %arg4[%c0_5, %c0_6] : memref<16x256xf32, #tpu.memory_space<vmem>>, vector<16x256xf32>
    tpu.vector_store %arg4[%c0_5, %c0_6], %6 {strides = array<i32>} : memref<16x256xf32, #tpu.memory_space<vmem>>, vector<16x256xf32>,
    return
  }
  func.func @transform_0(%arg0: i32) -> (i32, i32) {
    %c0_i32 = arith.constant 0 : i32
    %c0_i32_0 = arith.constant 0 : i32
    %c0_i32_1 = arith.constant 0 : i32
    return %c0_i32, %c0_i32_0 : i32, i32
  }
  func.func @transform_1(%arg0: i32) -> (i32, i32) {
    %c0_i32 = arith.constant 0 : i32
    %c0_i32_0 = arith.constant 0 : i32
    return %c0_i32, %arg0 : i32, i32
  }
  func.func @transform_2(%arg0: i32) -> (i32, i32) {
    %c0_i32 = arith.constant 0 : i32
    %c0_i32_0 = arith.constant 0 : i32
    return %c0_i32, %arg0 : i32, i32
  }
  func.func @transform_3(%arg0: i32) -> (i32, i32) {
    %c0_i32 = arith.constant 0 : i32
    %c0_i32_0 = arith.constant 0 : i32
    return %c0_i32, %arg0 : i32, i32
  }
}

</mosaic_0001>

<llo_original>
// kernel: tpu_custom_call.1
$region0: #{tpu_custom_call.1}
  #allocation0 [shape = 'u32[]', space=smem, size = 0x4, offset = 0x4, fixed_abs, tag = 'smem constant byte address 0x4 - core index']
  #allocation1 [shape = 'u32[144,128]{1,0:T(1,128)}', space=vmem, size = 0x12000, scoped, tag = 'internal scratch']
  %s0 = inlined_call_operand.hbm [shape: f32[16,64], index: 0, kind: input, shape index: {}]
  %s1 = inlined_call_operand.hbm [shape: bf16[64,256], index: 1, kind: input, shape index: {}]
  %s2 = inlined_call_operand.vmem [shape: f32[1,256], index: 2, kind: input, shape index: {}]
  %s3 = inlined_call_operand.hbm [shape: f32[16,256], index: 3, kind: output, shape index: {}]
  %s4 = sld [smem:[#allocation0]]
  $region30: #{tpu_custom_call.1} parent=0
    _
  %s6 = ssub.s32 1, %s4
  %s7 = scalar_select 0, %s6, %s4
  $region1: #{tpu_custom_call.1} parent=0
    #allocation2 [shape = 'u8[8192]{0}', space=vmem, size = 0x2000, scoped, tag = 'input window, operand 0, single buffered']
    #allocation3 [shape = 's32[1]{0}', space=sflag, size = 0x4, scoped, tag = 'scoped memory for tpu_custom_call.1']
    #allocation4 [shape = 's32[1]{0}', space=sflag, size = 0x4, scoped, tag = 'scoped memory for tpu_custom_call.1']
    #allocation5 [shape = 'u8[32768]{0}', space=vmem, size = 0x8000, scoped, tag = 'input window, operand 1, single buffered']
    #allocation6 [shape = 's32[1]{0}', space=sflag, size = 0x4, scoped, tag = 'scoped memory for tpu_custom_call.1']
    #allocation7 [shape = 'u8[16384]{0}', space=vmem, size = 0x4000, scoped, tag = 'output window, operand 0, single buffered']
    %8 = vsyncpa [#allocation3], 0
    %9 = vsyncpa [#allocation6], 0
    %10 = vsyncpa [#allocation4], 0
    // Predicated region
    $region2: #{tpu_custom_call.1} parent=1 // pred_check
      _
    $region3: #{tpu_custom_call.1} parent=1 // pred_check_branch
      %12 = sbr.rel (0) target = $region5
    $region4: #{tpu_custom_call.1} parent=1 // pred_region
      %s14 = ssub.s32 256, 256
      %15 = vsyncadd [#allocation3], %s14
      %s16 = sshll.u32 [#allocation2], 4
      %s17 = int_to_ptr.vmem [resolvable:$true] %s16
      %22 = dma.hbm_to_vmem [thread:$0]  %s0, 256, %s17, [#allocation3], 128, 128, 8
    $region5: #{tpu_custom_call.1} parent=1 // pred_fallthru
      _
    // Predicated region
    $region6: #{tpu_custom_call.1} parent=1 // pred_check
      _
    $region7: #{tpu_custom_call.1} parent=1 // pred_check_branch
      %24 = sbr.rel (0) target = $region9
    $region8: #{tpu_custom_call.1} parent=1 // pred_region
      %s26 = ssub.s32 1024, 1024
      %27 = vsyncadd [#allocation6], %s26
      %s28 = sshll.u32 [#allocation5], 4
      %s29 = int_to_ptr.vmem [resolvable:$true] %s28
      %34 = dma.hbm_to_vmem [thread:$0]  %s1, 1024, %s29, [#allocation6], 128, 128, 8
    $region9: #{tpu_custom_call.1} parent=1 // pred_fallthru
      _
    // Predicated region
    $region10: #{tpu_custom_call.1} parent=1 // pred_check
      _
    $region11: #{tpu_custom_call.1} parent=1 // pred_check_branch
      %36 = sbr.rel (0) target = $region13
    $region12: #{tpu_custom_call.1} parent=1 // pred_region
      _
    $region13: #{tpu_custom_call.1} parent=1 // pred_fallthru
      _
    // Predicated region
    $region14: #{tpu_custom_call.1} parent=1 // pred_check
      _
    $region15: #{tpu_custom_call.1} parent=1 // pred_check_branch
      %38 = sbr.rel (0) target = $region17
    $region16: #{tpu_custom_call.1} parent=1 // pred_region
      %39 = dma.done [#allocation3], 256
    $region17: #{tpu_custom_call.1} parent=1 // pred_fallthru
      _
    // Predicated region
    $region18: #{tpu_custom_call.1} parent=1 // pred_check
      _
    $region19: #{tpu_custom_call.1} parent=1 // pred_check_branch
      %41 = sbr.rel (0) target = $region21
    $region20: #{tpu_custom_call.1} parent=1 // pred_region
      %42 = dma.done [#allocation6], 1024
    $region21: #{tpu_custom_call.1} parent=1 // pred_fallthru
      _
    %v44 = vld [vmem:[#allocation2] sm:$0xff]
    %v45 = vld [vmem:[#allocation2 + $0x8] sm:$0xff]
    %v46 = vpack.c.bf16 %v45, %v44
    %v47 = vld [vmem:[#allocation5] sm:$0xff]
    %v48 = vld [vmem:[#allocation5 + $0x8] sm:$0xff]
    %v49 = vld [vmem:[#allocation5 + $0x10] sm:$0xff]
    %v50 = vld [vmem:[#allocation5 + $0x18] sm:$0xff]
    %v51 = vld [vmem:[#allocation5 + $0x20] sm:$0xff]
    %v52 = vld [vmem:[#allocation5 + $0x28] sm:$0xff]
    %v53 = vld [vmem:[#allocation5 + $0x30] sm:$0xff]
    %v54 = vld [vmem:[#allocation5 + $0x38] sm:$0xff]
    %v55 = vld [vmem:[%s2] sm:$0x3]
    %v57 = vlaneseq
    %v58 = vshrl.u32 %v57, 7
    %v59 = vsub.s32 0, %v58
    %v60 = vrot.slane %v55, %v59
    %v61 = vlaneseq
    %v62 = vshrl.u32 %v61, 7
    %v63 = vsub.s32 1, %v62
    %v64 = vrot.slane %v55, %v63
    %v75 = vunpack.c.l.b16 %v47
    %v76 = vunpack.c.h.b16 %v47
    %v77 = vunpack.c.l.b16 %v48
    %v78 = vunpack.c.h.b16 %v48
    %v79 = vunpack.c.l.b16 %v49
    %v80 = vunpack.c.h.b16 %v49
    %v81 = vunpack.c.l.b16 %v50
    %v82 = vunpack.c.h.b16 %v50
    %v83 = vunpack.c.l.b16 %v51
    %v84 = vunpack.c.h.b16 %v51
    %v85 = vunpack.c.l.b16 %v52
    %v86 = vunpack.c.h.b16 %v52
    %v87 = vunpack.c.l.b16 %v53
    %v88 = vunpack.c.h.b16 %v53
    %v89 = vunpack.c.l.b16 %v54
    %v90 = vunpack.c.h.b16 %v54
    %v91 = vpack.c.b16 %v77, %v75
    %v92 = vpack.c.b16 %v78, %v76
    %v93 = vpack.c.b16 %v81, %v79
    %v94 = vpack.c.b16 %v82, %v80
    %v95 = vpack.c.b16 %v85, %v83
    %v96 = vpack.c.b16 %v86, %v84
    %v97 = vpack.c.b16 %v89, %v87
    %v98 = vpack.c.b16 %v90, %v88
    %vm107 = vcmask 523264
    %v109 = vsel %vm107, %v46, 0
    %111 = vmatprep.subr.bf16.mxu0 0
    %112 = vmatpush1.bf16.msra.mxu0 0
    %113 = vmatprep.subr.bf16.mxu0 0
    %114 = vmatpush1.bf16.msra.mxu0 0
    %115 = vmatprep.subr.bf16.mxu0 0
    %116 = vmatpush1.bf16.msra.mxu0 0
    %117 = vmatprep.subr.bf16.mxu0 0
    %118 = vmatpush1.bf16.msra.mxu0 0
    %119 = vmatprep.subr.bf16.mxu0 %v98
    %120 = vmatpush1.bf16.msra.mxu0 %v97
    %121 = vmatprep.subr.bf16.mxu0 %v96
    %122 = vmatpush1.bf16.msra.mxu0 %v95
    %123 = vmatprep.subr.bf16.mxu0 %v94
    %124 = vmatpush1.bf16.msra.mxu0 %v93
    %125 = vmatprep.subr.bf16.mxu0 %v92
    %126 = vmatpush1.bf16.msra.mxu0 %v91
    %127 = vmatprep.subr.bf16.mxu0 0
    %128 = vmatpush2.bf16.msra.mxu0 0
    %129 = vmatprep.subr.bf16.mxu0 0
    %130 = vmatpush2.bf16.msra.mxu0 0
    %131 = vmatprep.subr.bf16.mxu0 0
    %132 = vmatpush2.bf16.msra.mxu0 0
    %133 = vmatprep.subr.bf16.mxu0 0
    %134 = vmatpush2.bf16.msra.mxu0 0
    %135 = vmatprep.subr.bf16.mxu0 0
    %136 = vmatpush2.bf16.msra.mxu0 0
    %137 = vmatprep.subr.bf16.mxu0 0
    %138 = vmatpush2.bf16.msra.mxu0 0
    %139 = vmatprep.subr.bf16.mxu0 0
    %140 = vmatpush2.bf16.msra.mxu0 0
    %141 = vmatprep.subr.bf16.mxu0 0
    %142 = vmatpush2.bf16.msra.mxu0 0
    %143 = vmatprep.mubr.bf16.mxu0 0
    %144 = vmatmul.mubr.bf16.gmra.mxu0 %v109
    %v145 = vpop.f32.mrf.mxu0
    %v146 = vadd.f32 %v60, %v145
    %v147 = vpop.f32.mrf.mxu0
    %v148 = vadd.f32 %v64, %v147
    %v149 = vpop.f32.mrf.mxu0
    %v150 = vadd.f32 %v60, %v149
    %v151 = vpop.f32.mrf.mxu0
    %v152 = vadd.f32 %v64, %v151
    %153 = vdwg.mxu0
    %154 = vst [vmem:[#allocation7] sm:$0xff] %v146
    %155 = vst [vmem:[#allocation7 + $0x8] sm:$0xff] %v148
    %156 = vst [vmem:[#allocation7 + $0x10] sm:$0xff] %v150
    %157 = vst [vmem:[#allocation7 + $0x18] sm:$0xff] %v152
    // Predicated region
    $region22: #{tpu_custom_call.1} parent=1 // pred_check
      _
    $region23: #{tpu_custom_call.1} parent=1 // pred_check_branch
      %159 = sbr.rel (0) target = $region25
    $region24: #{tpu_custom_call.1} parent=1 // pred_region
      %s161 = ssub.s32 512, 512
      %162 = vsyncadd [#allocation4], %s161
      %s163 = sshll.u32 [#allocation7], 4
      %s164 = int_to_ptr.vmem [resolvable:$true] %s163
      %169 = dma.vmem_to_hbm [thread:$0]  %s164, 512, %s3, [#allocation4], 256, 256, 16
    $region25: #{tpu_custom_call.1} parent=1 // pred_fallthru
      _
    // Predicated region
    $region26: #{tpu_custom_call.1} parent=1 // pred_check
      _
    $region27: #{tpu_custom_call.1} parent=1 // pred_check_branch
      %171 = sbr.rel (0) target = $region29
    $region28: #{tpu_custom_call.1} parent=1 // pred_region
      %172 = dma.done [#allocation4], 512
    $region29: #{tpu_custom_call.1} parent=1 // pred_fallthru
      _
    %173 = vsyncpa [#allocation3], 1
    %174 = vsyncpa [#allocation6], 1
    %175 = vsyncpa [#allocation4], 1

</llo_original>
